<compile_context>
chip_gen: v6e
topology: v6e:2x2x1
jax: 0.10.0
libtpu: 0.0.40
codegen_flags: <defaults>
</compile_context>

<pallas_src>
import functools

import jax
import jax.numpy as jnp
from jax.experimental import pallas as pl
from jax.experimental.pallas import tpu as pltpu

_LANES = 128           # vreg lane width
_SUBLANES = 8          # f32 vreg sublane depth
_MAX_TILE_ROWS = 2048  # 2048 * 128 * 3 planes * 4 B = 3 MiB per input block


def _round_up(x, m):
    return ((x + m - 1) // m) * m


def _physics_loss_kernel(packed_ref, out_ref, *, tile_rows, total_rows):
    """packed_ref: (3, tile_rows, 128) planes = [emb[:,0], feat[:,2], feat[:,3]].
    out_ref:    (8, 128) f32 running SSE accumulator (VMEM-resident across grid)."""
    i = pl.program_id(0)

    @pl.when(i == 0)
    def _():
        out_ref[...] = jnp.zeros_like(out_ref)

    emb0 = packed_ref[0].astype(jnp.float32)      # (tile_rows, 128), dense vregs
    load = packed_ref[1].astype(jnp.float32)
    gen = packed_ref[2].astype(jnp.float32)

    diff = emb0 - jnp.tanh((load - gen) * 0.1)    # EUP tanh + full-width VPU ops
    d2 = diff * diff

    if total_rows % tile_rows != 0:
        # The last (partial) grid tile reads past the packed array; those rows
        # are unspecified and must be masked.  Rows that are in-bounds but in
        # the zero-padded node range already contribute (0 - tanh(0))^2 = 0.
        row = jax.lax.broadcasted_iota(jnp.int32, (tile_rows, _LANES), 0)
        d2 = jnp.where(i * tile_rows + row < total_rows, d2, 0.0)

    # Fold the tile into the single-vreg accumulator: each (8, 128) group is
    # exactly one vreg, so the major-axis sum is a chain of VPU adds (no XLU).
    out_ref[...] += jnp.sum(
        d2.reshape(tile_rows // _SUBLANES, _SUBLANES, _LANES), axis=0)


def physics_consistency_loss(node_embeddings, node_features,
                             edge_index=None, edge_attr=None, batch=None,
                             *, max_tile_rows=_MAX_TILE_ROWS):
    """JAX/Pallas equivalent of PhysicsConsistencyLoss.forward.

    edge_index / edge_attr / batch are accepted for signature parity but are
    unused by the reference forward pass.
    """
    n, num_feat = node_features.shape
    if num_feat < 4:
        return jnp.float32(0.0)
    if n == 0:
        return jnp.float32(jnp.nan)   # F.mse_loss on empty input is NaN

    # Pad nodes only to the 1024 (= 8*128) vreg granularity; zero nodes are
    # exact zeros and contribute nothing to the SSE.
    n_pad = _round_up(n, _SUBLANES * _LANES)
    pad = n_pad - n

    def column(x, j):
        c = x[:, j]
        return jnp.pad(c, (0, pad)) if pad else c

    # Pack only the 3 used columns, node-dense: 12 B/node of HBM traffic.
    packed = jnp.stack(
        [column(node_embeddings, 0), column(node_features, 2),
         column(node_features, 3)], axis=0)
    total_rows = n_pad // _LANES
    packed = packed.reshape(3, total_rows, _LANES)

    max_tile_rows = _round_up(max(int(max_tile_rows), _SUBLANES), _SUBLANES)
    tile_rows = min(total_rows, max_tile_rows)       # multiple of 8 by construction
    num_tiles = pl.cdiv(total_rows, tile_rows)

    kernel = functools.partial(_physics_loss_kernel,
                               tile_rows=tile_rows, total_rows=total_rows)

    acc = pl.pallas_call(
        kernel,
        out_shape=jax.ShapeDtypeStruct((_SUBLANES, _LANES), jnp.float32),
        grid_spec=pltpu.PrefetchScalarGridSpec(
            num_scalar_prefetch=0,
            grid=(num_tiles,),
            in_specs=[pl.BlockSpec((3, tile_rows, _LANES), lambda i: (0, i, 0))],
            out_specs=pl.BlockSpec((_SUBLANES, _LANES), lambda i: (0, 0)),
        ),
        compiler_params=pltpu.CompilerParams(
            dimension_semantics=("arbitrary",)),
    )(packed)

    # One final cross-lane/sublane reduce of a single vreg, then the exact mean
    # over the true N*1 elements (F.mse_loss, reduction='mean').
    return (jnp.sum(acc) / jnp.float32(n)).astype(jnp.float32)


def _reference_loss(node_embeddings, node_features):
    load = node_features[:, 2]
    gen = node_features[:, 3]
    power_embedding = jnp.tanh((load - gen)[:, None] * 0.1)
    embedding_power_dim = node_embeddings[:, 0:1]
    return jnp.mean((embedding_power_dim - power_embedding) ** 2)


if __name__ == "__main__":
    key = jax.random.PRNGKey(0)
    k1, k2, k3, k4, k5 = jax.random.split(key, 5)

    # Small graph (exercises tail zero-padding): 16 nodes, 32-dim emb, 6 features.
    N, D, F, E = 16, 32, 6, 24
    node_embeddings = jax.random.normal(k1, (N, D), dtype=jnp.float32)
    node_features = jax.random.normal(k2, (N, F), dtype=jnp.float32) * 5.0
    edge_index = jax.random.randint(k3, (2, E), 0, N, dtype=jnp.int32)  # unused by forward

    loss = jax.block_until_ready(
        physics_consistency_loss(node_embeddings, node_features, edge_index))
    ref = _reference_loss(node_embeddings, node_features)
    assert jnp.allclose(loss, ref, rtol=1e-5, atol=1e-6), (loss, ref)

    # Multi-tile + partial-last-tile path (small max_tile_rows keeps shapes tiny):
    # N=5000 -> 40 packed rows, 16-row tiles, 3 grid steps, masked last tile.
    N2 = 5000
    emb2 = jax.random.normal(k4, (N2, D), dtype=jnp.float32)
    feat2 = jax.random.normal(k5, (N2, F), dtype=jnp.float32) * 5.0
    loss2 = jax.block_until_ready(
        physics_consistency_loss(emb2, feat2, edge_index, max_tile_rows=16))
    ref2 = _reference_loss(emb2, feat2)
    assert jnp.allclose(loss2, ref2, rtol=1e-5, atol=1e-6), (loss2, ref2)

    print("KERNEL_OK")
</pallas_src>

<mosaic_0001>
module attributes {stable_mosaic.version = 11 : i64} {
  func.func @_physics_loss_kernel(%arg0: i32, %arg1: memref<3x8x128xf32, #tpu.memory_space<vmem>>, %arg2: memref<8x128xf32, #tpu.memory_space<vmem>>) attributes {dimension_semantics = [#tpu.dimension_semantics<arbitrary>], iteration_bounds = array<i64: 1>, scalar_prefetch = 0 : i64, scratch_operands = 0 : i64, tpu.core_type = #tpu.core_type<tc>, window_params = [{transform_indices = @transform_0, window_bounds = array<i64: 3, 8, 128>}, {pipeline_mode = #tpu.pipeline_mode<synchronous>, transform_indices = @transform_1, window_bounds = array<i64: 8, 128>}]} {
    %c0_i32 = arith.constant 0 : i32
    %0 = arith.cmpi eq, %arg0, %c0_i32 : i32
    %1 = arith.extui %0 : i1 to i32
    %c0_i32_0 = arith.constant 0 : i32
    %2 = arith.cmpi ne, %1, %c0_i32_0 : i32
    scf.if %2 {
      %cst_12 = arith.constant 0.000000e+00 : f32
      %20 = vector.broadcast %cst_12 : f32 to vector<8x128xf32>
      %c0_13 = arith.constant 0 : index
      %c0_14 = arith.constant 0 : index
      %21 = vector.load %arg2[%c0_13, %c0_14] : memref<8x128xf32, #tpu.memory_space<vmem>>, vector<8x128xf32>
      tpu.vector_store %arg2[%c0_13, %c0_14], %20 {strides = array<i32>} : memref<8x128xf32, #tpu.memory_space<vmem>>, vector<8x128xf32>,
    } else {
    }
    %c0 = arith.constant 0 : index
    %c0_1 = arith.constant 0 : index
    %c0_2 = arith.constant 0 : index
    %3 = vector.load %arg1[%c0, %c0_1, %c0_2] : memref<3x8x128xf32, #tpu.memory_space<vmem>>, vector<1x8x128xf32>
    %4 = vector.shape_cast %3 : vector<1x8x128xf32> to vector<8x128xf32>
    %c1 = arith.constant 1 : index
    %c0_3 = arith.constant 0 : index
    %c0_4 = arith.constant 0 : index
    %5 = vector.load %arg1[%c1, %c0_3, %c0_4] : memref<3x8x128xf32, #tpu.memory_space<vmem>>, vector<1x8x128xf32>
    %6 = vector.shape_cast %5 : vector<1x8x128xf32> to vector<8x128xf32>
    %c2 = arith.constant 2 : index
    %c0_5 = arith.constant 0 : index
    %c0_6 = arith.constant 0 : index
    %7 = vector.load %arg1[%c2, %c0_5, %c0_6] : memref<3x8x128xf32, #tpu.memory_space<vmem>>, vector<1x8x128xf32>
    %8 = vector.shape_cast %7 : vector<1x8x128xf32> to vector<8x128xf32>
    %9 = arith.subf %6, %8 : vector<8x128xf32>
    %cst = arith.constant 1.000000e-01 : f32
    %10 = vector.broadcast %cst : f32 to vector<8x128xf32>
    %11 = arith.mulf %9, %10 : vector<8x128xf32>
    %12 = math.tanh %11 : vector<8x128xf32>
    %13 = arith.subf %4, %12 : vector<8x128xf32>
    %14 = arith.mulf %13, %13 : vector<8x128xf32>
    %c0_7 = arith.constant 0 : index
    %c0_8 = arith.constant 0 : index
    %15 = vector.load %arg2[%c0_7, %c0_8] : memref<8x128xf32, #tpu.memory_space<vmem>>, vector<8x128xf32>
    %16 = vector.shape_cast %14 : vector<8x128xf32> to vector<1x8x128xf32>
    %cst_9 = arith.constant dense<0.000000e+00> : vector<8x128xf32>
    %17 = vector.multi_reduction <add>, %16, %cst_9 [0] : vector<1x8x128xf32> to vector<8x128xf32>
    %18 = arith.addf %15, %17 : vector<8x128xf32>
    %c0_10 = arith.constant 0 : index
    %c0_11 = arith.constant 0 : index
    %19 = vector.load %arg2[%c0_10, %c0_11] : memref<8x128xf32, #tpu.memory_space<vmem>>, vector<8x128xf32>
    tpu.vector_store %arg2[%c0_10, %c0_11], %18 {strides = array<i32>} : memref<8x128xf32, #tpu.memory_space<vmem>>, vector<8x128xf32>,
    return
  }
  func.func @transform_0(%arg0: i32) -> (i32, i32, i32) {
    %c0_i32 = arith.constant 0 : i32
    %c0_i32_0 = arith.constant 0 : i32
    %c0_i32_1 = arith.constant 0 : i32
    return %c0_i32, %arg0, %c0_i32_0 : i32, i32, i32
  }
  func.func @transform_1(%arg0: i32) -> (i32, i32) {
    %c0_i32 = arith.constant 0 : i32
    %c0_i32_0 = arith.constant 0 : i32
    %c0_i32_1 = arith.constant 0 : i32
    return %c0_i32, %c0_i32_0 : i32, i32
  }
}

</mosaic_0001>

<llo_original>
// kernel: tpu_custom_call.1
$region0: #{tpu_custom_call.1}
  #allocation0 [shape = 'u32[]', space=smem, size = 0x4, offset = 0x4, fixed_abs, tag = 'smem constant byte address 0x4 - core index']
  #allocation1 [shape = 'u32[144,128]{1,0:T(1,128)}', space=vmem, size = 0x12000, scoped, tag = 'internal scratch']
  %s0 = inlined_call_operand.hbm [shape: f32[3,8,128], index: 0, kind: input, shape index: {}]
  %s1 = inlined_call_operand.hbm [shape: f32[8,128], index: 1, kind: output, shape index: {}]
  %s2 = sld [smem:[#allocation0]]
  $region22: #{tpu_custom_call.1} parent=0
    _
  %s4 = ssub.s32 1, %s2
  %s5 = scalar_select 0, %s4, %s2
  $region1: #{tpu_custom_call.1} parent=0
    #allocation2 [shape = 'u8[12288]{0}', space=vmem, size = 0x3000, scoped, tag = 'input window, operand 0, single buffered']
    #allocation3 [shape = 's32[1]{0}', space=sflag, size = 0x4, scoped, tag = 'scoped memory for tpu_custom_call.1']
    #allocation4 [shape = 's32[1]{0}', space=sflag, size = 0x4, scoped, tag = 'scoped memory for tpu_custom_call.1']
    #allocation5 [shape = 'u8[4096]{0}', space=vmem, size = 0x1000, scoped, tag = 'output window, operand 0, single buffered']
    %6 = vsyncpa [#allocation3], 0
    %7 = vsyncpa [#allocation4], 0
    // Predicated region
    $region2: #{tpu_custom_call.1} parent=1 // pred_check
      _
    $region3: #{tpu_custom_call.1} parent=1 // pred_check_branch
      %9 = sbr.rel (0) target = $region5
    $region4: #{tpu_custom_call.1} parent=1 // pred_region
      %s11 = ssub.s32 384, 384
      %12 = vsyncadd [#allocation3], %s11
      %s13 = sshll.u32 [#allocation2], 4
      %s14 = int_to_ptr.vmem [resolvable:$true] %s13
      %19 = dma.hbm_to_vmem [thread:$0]  %s0, 384, %s14, [#allocation3], 128, 128, 8
    $region5: #{tpu_custom_call.1} parent=1 // pred_fallthru
      _
    // Predicated region
    $region6: #{tpu_custom_call.1} parent=1 // pred_check
      _
    $region7: #{tpu_custom_call.1} parent=1 // pred_check_branch
      %21 = sbr.rel (0) target = $region9
    $region8: #{tpu_custom_call.1} parent=1 // pred_region
      %22 = dma.done [#allocation3], 384
    $region9: #{tpu_custom_call.1} parent=1 // pred_fallthru
      _
    %p23 = scmp.eq.s32.totalorder 0, 0
    // Predicated region
    $region10: #{tpu_custom_call.1} parent=1 // pred_check
      %p24 = pneg %p23
    $region11: #{tpu_custom_call.1} parent=1 // pred_check_branch
      %26 = sbr.rel (%p24) target = $region13
    $region12: #{tpu_custom_call.1} parent=1 // pred_region
      %27 = vst [vmem:[#allocation5] sm:$0xff] 0.0
    $region13: #{tpu_custom_call.1} parent=1 // pred_fallthru
      _
    %v28 = vld [vmem:[#allocation2] sm:$0xff]
    %s29 = scalar_lea.vmem [#allocation2], 8
    %v30 = vld [vmem:[%s29] sm:$0xff]
    %s31 = scalar_lea.vmem [#allocation2], 16
    %v32 = vld [vmem:[%s31] sm:$0xff]
    %v33 = vsub.f32 %v30, %v32
    %v34 = vmul.f32 %v33, 0.1
    %v35 = vtanh.pop %v34
    %v36 = vsub.f32 %v28, %v35
    %v37 = vmul.f32 %v36, %v36
    %v38 = vld [vmem:[#allocation5] sm:$0xff]
    %v39 = vadd.f32 %v37, 0.0
    %v40 = vadd.f32 %v38, %v39
    %41 = vst [vmem:[#allocation5] sm:$0xff] %v40
    // Predicated region
    $region14: #{tpu_custom_call.1} parent=1 // pred_check
      _
    $region15: #{tpu_custom_call.1} parent=1 // pred_check_branch
      %43 = sbr.rel (0) target = $region17
    $region16: #{tpu_custom_call.1} parent=1 // pred_region
      %s45 = ssub.s32 128, 128
      %46 = vsyncadd [#allocation4], %s45
      %s48 = sshll.u32 [#allocation5], 4
      %s49 = int_to_ptr.vmem [resolvable:$true] %s48
      %51 = dma.vmem_to_hbm [thread:$0]  %s49, 128, %s1, [#allocation4]
    $region17: #{tpu_custom_call.1} parent=1 // pred_fallthru
      _
    // Predicated region
    $region18: #{tpu_custom_call.1} parent=1 // pred_check
      _
    $region19: #{tpu_custom_call.1} parent=1 // pred_check_branch
      %53 = sbr.rel (0) target = $region21
    $region20: #{tpu_custom_call.1} parent=1 // pred_region
      %54 = dma.done [#allocation4], 128
    $region21: #{tpu_custom_call.1} parent=1 // pred_fallthru
      _
    %55 = vsyncpa [#allocation3], 1
    %56 = vsyncpa [#allocation4], 1

</llo_original>
